<compile_context>
chip_gen: v5e
topology: v5e:2x2
jax: 0.10.0
libtpu: 0.0.40
codegen_flags: <defaults>
</compile_context>

<pallas_src>
import jax
import jax.numpy as jnp
from jax import lax
from jax.experimental import pallas as pl
from jax.experimental.pallas import tpu as pltpu

LANES = 128       # vreg lane width
SUBLANES = 8      # f32 sublanes per vreg


def _round_up(x, m):
    return (x + m - 1) // m * m


def _num_tensorcores():
    """Best-effort TensorCore count for the local chip (1 on v5e/v6e).

    TODO(synk): on v7x, verify in a trace that the "parallel" shard axis
    really splits across the 2 TensorCores; if it does not, switch the shard
    axis to pltpu.CORE_PARALLEL dimension semantics.
    """
    try:
        info = pltpu.get_tpu_info()
        for attr in ("num_cores", "num_tensorcores", "tensorcores_per_chip",
                     "cores_per_chip"):
            n = getattr(info, attr, None)
            if isinstance(n, int) and 1 <= n <= 8:
                return n
    except Exception:
        pass
    try:
        n = getattr(jax.devices()[0], "num_cores", None)
        if isinstance(n, int) and 1 <= n <= 8:
            return n
    except Exception:
        pass
    return 1


def _make_kernel(tile_rows, tiles_per_shard, num_data_tiles,
                 boundary_remaining, needs_mask, has_overhang):
    """Build the BCE-with-logits partial-sum kernel (all sizes static)."""
    n_groups = tile_rows // SUBLANES

    def _tile_partial_sum(loss):
        # (tile_rows, 128) -> (g, 8, 128) lines up exactly with the native
        # f32 (8, 128) tiling, so the reshape is a layout no-op and the
        # sum(axis=0) is pure VALU accumulation (no XLU on the hot path).
        return loss.reshape(n_groups, SUBLANES, LANES).sum(axis=0)

    def kernel(logits_ref, targets_ref, out_ref):
        s = pl.program_id(0)                     # shard   ("parallel")
        j = pl.program_id(1)                     # tile    ("arbitrary")
        tile_idx = s * tiles_per_shard + j

        @pl.when(j == 0)
        def _init():
            out_ref[...] = jnp.zeros_like(out_ref)

        def _compute():
            x = logits_ref[...].astype(jnp.float32)
            nz = targets_ref[...] != 0           # in-kernel binarize (free VPU)
            # Numerically stable BCE with logits:
            #   loss = max(x, 0) - x*t + log(1 + exp(-|x|)),  t = (target != 0)
            # exp(-|x|) <= 1, so the log argument lies in [1, 2] and plain
            # log is safe.
            # TODO(synk): on v7x evaluate a bf16 exp/log path if the EUP slot
            # becomes the binding unit once HBM traffic is at roofline.
            loss = (jnp.maximum(x, 0.0)
                    - jnp.where(nz, x, 0.0)
                    + jnp.log(1.0 + jnp.exp(-jnp.abs(x))))

            if needs_mask:
                is_boundary = tile_idx == num_data_tiles - 1

                @pl.when(is_boundary)
                def _boundary():
                    # Only the single boundary tile pays for the iota mask.
                    rows_i = lax.broadcasted_iota(jnp.int32,
                                                  (tile_rows, LANES), 0)
                    cols_i = lax.broadcasted_iota(jnp.int32,
                                                  (tile_rows, LANES), 1)
                    local = rows_i * LANES + cols_i
                    masked = jnp.where(local < boundary_remaining, loss, 0.0)
                    out_ref[...] += _tile_partial_sum(masked)

                @pl.when(jnp.logical_not(is_boundary))
                def _interior():
                    out_ref[...] += _tile_partial_sum(loss)
            else:
                out_ref[...] += _tile_partial_sum(loss)

        if has_overhang:
            # Overhang steps (shard rounding) skip accumulation entirely.
            pl.when(tile_idx < num_data_tiles)(_compute)
        else:
            _compute()

    return kernel


def _bce_reference(outputs, targets):
    """Pure-JAX reference (also the small-batch fallback path)."""
    x = jnp.asarray(outputs)
    if x.ndim > 0 and x.shape[-1] == 1:
        x = jnp.squeeze(x, axis=-1)
    x = x.astype(jnp.float32).reshape(-1)
    t = (jnp.asarray(targets) != 0).astype(jnp.float32).reshape(-1)
    return jnp.mean(jnp.maximum(x, 0.0) - x * t + jnp.log1p(jnp.exp(-jnp.abs(x))))


def my_bce_with_logit(outputs, targets, *, tile_rows=8192,
                      min_pallas_batch=16384):
    """outputs: (B, 1) or (B,) logits; targets: (B,) class indices.

    Returns the scalar f32 mean BCE-with-logits loss, matching
    nn.BCEWithLogitsLoss(reduction='mean') applied to
    (outputs.squeeze(-1), (targets != 0).float()).
    """
    logits = jnp.asarray(outputs)
    tgts = jnp.asarray(targets)
    if logits.ndim > 0 and logits.shape[-1] == 1:
        logits = jnp.squeeze(logits, axis=-1)

    b = int(logits.size)
    rows_total = pl.cdiv(b, LANES)

    # Tiny batches: a single fused XLA expression beats kernel-launch +
    # wrapper overhead (and avoids degenerate < 8-row layouts).
    if b < min_pallas_batch or rows_total < SUBLANES:
        return _bce_reference(outputs, targets)

    x = logits.reshape(-1)
    if x.dtype == jnp.float64:
        x = x.astype(jnp.float32)       # keep bf16/f32 as-is; upcast per tile
    t = tgts.reshape(-1)
    if t.dtype == jnp.bool_ or t.dtype.itemsize > 4:
        t = (t != 0).astype(jnp.int8)   # only bool / 64-bit need a cast pass

    # Pad only the ragged tail up to the next multiple of 128 (required for
    # the zero-copy (rows, 128) reshape).  No copy at all if B % 128 == 0.
    b128 = rows_total * LANES
    if b128 != b:
        x = jnp.pad(x, (0, b128 - b))
        t = jnp.pad(t, (0, b128 - b))
    x2 = x.reshape(rows_total, LANES)
    t2 = t.reshape(rows_total, LANES)

    # Tile rows: multiple of 8, never larger than the data, so the only
    # ragged block is the standard partial trailing block handled by Pallas.
    req = _round_up(max(int(tile_rows), SUBLANES), SUBLANES)
    tr = min(req, (rows_total // SUBLANES) * SUBLANES)
    num_data_tiles = pl.cdiv(rows_total, tr)

    num_shards = min(_num_tensorcores(), num_data_tiles)
    tiles_per_shard = pl.cdiv(num_data_tiles, num_shards)
    has_overhang = num_shards * tiles_per_shard != num_data_tiles

    tile_elems = tr * LANES
    needs_mask = num_data_tiles * tile_elems != b
    # The boundary tile index is static, so its valid-element count is a
    # plain Python int (no int32 flat-index overflow risk for huge batches).
    boundary_remaining = b - (num_data_tiles - 1) * tile_elems

    kernel = _make_kernel(tr, tiles_per_shard, num_data_tiles,
                          boundary_remaining, needs_mask, has_overhang)

    if has_overhang:
        def in_idx(s, j):
            return (jnp.minimum(s * tiles_per_shard + j, num_data_tiles - 1), 0)
    else:
        def in_idx(s, j):
            return (s * tiles_per_shard + j, 0)

    # Double-buffered input blocks + headroom; 32 MiB floor fits every
    # generation (v5e scoped default is only 16 MiB).
    needed = 2 * tile_elems * (x2.dtype.itemsize + t2.dtype.itemsize)
    vmem_limit = max(needed + (2 << 20), 32 << 20)

    partials = pl.pallas_call(
        kernel,
        out_shape=jax.ShapeDtypeStruct((num_shards * SUBLANES, LANES),
                                       jnp.float32),
        grid_spec=pltpu.PrefetchScalarGridSpec(
            num_scalar_prefetch=0,
            grid=(num_shards, tiles_per_shard),
            in_specs=[pl.BlockSpec((tr, LANES), in_idx),
                      pl.BlockSpec((tr, LANES), in_idx)],
            out_specs=pl.BlockSpec((SUBLANES, LANES), lambda s, j: (s, 0)),
        ),
        compiler_params=pltpu.CompilerParams(
            dimension_semantics=("parallel", "arbitrary"),
            vmem_limit_bytes=int(vmem_limit)),
    )(x2, t2)

    # Single tiny cross-lane reduce + mean divide, once, outside the kernel.
    return jnp.sum(partials) / b


if __name__ == "__main__":
    key = jax.random.PRNGKey(0)
    k1, k2, k3, k4, k5, k6 = jax.random.split(key, 6)

    # Case 1: small 128-aligned batch, (B, 1) logit layout, single tile,
    # no wrapper pad, no mask.  min_pallas_batch=0 forces the Pallas path.
    B1 = 1024
    out1 = jax.random.normal(k1, (B1, 1), dtype=jnp.float32)
    tgt1 = jax.random.randint(k2, (B1,), minval=0, maxval=3, dtype=jnp.int32)
    loss1 = my_bce_with_logit(out1, tgt1, min_pallas_batch=0)
    jax.block_until_ready(loss1)
    ref1 = _bce_reference(out1, tgt1)
    assert jnp.allclose(loss1, ref1, atol=1e-5, rtol=1e-5), (loss1, ref1)

    # Case 2: non-128-aligned batch -> wrapper tail pad + boundary mask,
    # multi-tile accumulation into the resident output block.
    B2 = 2000
    out2 = jax.random.normal(k3, (B2, 1), dtype=jnp.float32)
    tgt2 = jax.random.randint(k4, (B2,), minval=0, maxval=2, dtype=jnp.int32)
    loss2 = my_bce_with_logit(out2, tgt2, tile_rows=8, min_pallas_batch=0)
    jax.block_until_ready(loss2)
    ref2 = _bce_reference(out2, tgt2)
    assert jnp.allclose(loss2, ref2, atol=1e-5, rtol=1e-5), (loss2, ref2)

    # Case 3: larger batch exercising the Pallas partial trailing block
    # (157 rows, 32-row tiles) plus the boundary mask.
    B3 = 20000
    out3 = jax.random.normal(k5, (B3, 1), dtype=jnp.float32)
    tgt3 = jax.random.randint(k6, (B3,), minval=0, maxval=2, dtype=jnp.int32)
    loss3 = my_bce_with_logit(out3, tgt3, tile_rows=32, min_pallas_batch=0)
    jax.block_until_ready(loss3)
    ref3 = _bce_reference(out3, tgt3)
    assert jnp.allclose(loss3, ref3, atol=1e-5, rtol=1e-5), (loss3, ref3)

    print("KERNEL_OK")
</pallas_src>

<mosaic_0001>
module attributes {stable_mosaic.version = 11 : i64} {
  func.func @kernel(%arg0: i32, %arg1: i32, %arg2: memref<8x128xf32, #tpu.memory_space<vmem>>, %arg3: memref<8x128xi32, #tpu.memory_space<vmem>>, %arg4: memref<8x128xf32, #tpu.memory_space<vmem>>) attributes {dimension_semantics = [#tpu.dimension_semantics<parallel>, #tpu.dimension_semantics<arbitrary>], iteration_bounds = array<i64: 1, 1>, scalar_prefetch = 0 : i64, scratch_operands = 0 : i64, tpu.core_type = #tpu.core_type<tc>, window_params = [{transform_indices = @transform_0, window_bounds = array<i64: 8, 128>}, {transform_indices = @transform_1, window_bounds = array<i64: 8, 128>}, {transform_indices = @transform_2, window_bounds = array<i64: 8, 128>}]} {
    %c0_i32 = arith.constant 0 : i32
    %0 = arith.cmpi eq, %arg1, %c0_i32 : i32
    %1 = arith.extui %0 : i1 to i32
    %c0_i32_0 = arith.constant 0 : i32
    %2 = arith.cmpi ne, %1, %c0_i32_0 : i32
    scf.if %2 {
      %cst_13 = arith.constant 0.000000e+00 : f32
      %25 = vector.broadcast %cst_13 : f32 to vector<8x128xf32>
      %c0_14 = arith.constant 0 : index
      %c0_15 = arith.constant 0 : index
      %26 = vector.load %arg4[%c0_14, %c0_15] : memref<8x128xf32, #tpu.memory_space<vmem>>, vector<8x128xf32>
      tpu.vector_store %arg4[%c0_14, %c0_15], %25 {strides = array<i32>} : memref<8x128xf32, #tpu.memory_space<vmem>>, vector<8x128xf32>,
    } else {
    }
    %c0 = arith.constant 0 : index
    %c0_1 = arith.constant 0 : index
    %3 = vector.load %arg2[%c0, %c0_1] : memref<8x128xf32, #tpu.memory_space<vmem>>, vector<8x128xf32>
    %c0_2 = arith.constant 0 : index
    %c0_3 = arith.constant 0 : index
    %4 = vector.load %arg3[%c0_2, %c0_3] : memref<8x128xi32, #tpu.memory_space<vmem>>, vector<8x128xi32>
    %c0_i32_4 = arith.constant 0 : i32
    %5 = vector.broadcast %c0_i32_4 : i32 to vector<8x128xi32>
    %6 = arith.cmpi ne, %4, %5 : vector<8x128xi32>
    %cst = arith.constant 0.000000e+00 : f32
    %7 = vector.broadcast %cst : f32 to vector<8x128xf32>
    %8 = arith.maximumf %3, %7 : vector<8x128xf32>
    %cst_5 = arith.constant 0.000000e+00 : f32
    %9 = vector.broadcast %cst_5 : f32 to vector<8x128xf32>
    %10 = arith.select %6, %3, %9 : vector<8x128xi1>, vector<8x128xf32>
    %11 = arith.subf %8, %10 : vector<8x128xf32>
    %12 = math.absf %3 : vector<8x128xf32>
    %cst_6 = arith.constant 0.000000e+00 : f32
    %13 = vector.broadcast %cst_6 : f32 to vector<8x128xf32>
    %14 = arith.subf %13, %12 : vector<8x128xf32>
    %15 = math.exp %14 : vector<8x128xf32>
    %cst_7 = arith.constant 1.000000e+00 : f32
    %16 = vector.broadcast %cst_7 : f32 to vector<8x128xf32>
    %17 = arith.addf %16, %15 : vector<8x128xf32>
    %18 = math.log %17 : vector<8x128xf32>
    %19 = arith.addf %11, %18 : vector<8x128xf32>
    %c0_8 = arith.constant 0 : index
    %c0_9 = arith.constant 0 : index
    %20 = vector.load %arg4[%c0_8, %c0_9] : memref<8x128xf32, #tpu.memory_space<vmem>>, vector<8x128xf32>
    %21 = vector.shape_cast %19 : vector<8x128xf32> to vector<1x8x128xf32>
    %cst_10 = arith.constant dense<0.000000e+00> : vector<8x128xf32>
    %22 = vector.multi_reduction <add>, %21, %cst_10 [0] : vector<1x8x128xf32> to vector<8x128xf32>
    %23 = arith.addf %20, %22 : vector<8x128xf32>
    %c0_11 = arith.constant 0 : index
    %c0_12 = arith.constant 0 : index
    %24 = vector.load %arg4[%c0_11, %c0_12] : memref<8x128xf32, #tpu.memory_space<vmem>>, vector<8x128xf32>
    tpu.vector_store %arg4[%c0_11, %c0_12], %23 {strides = array<i32>} : memref<8x128xf32, #tpu.memory_space<vmem>>, vector<8x128xf32>,
    return
  }
  func.func @transform_0(%arg0: i32, %arg1: i32) -> (i32, i32) {
    %c1_i32 = arith.constant 1 : i32
    %0 = arith.muli %arg0, %c1_i32 : i32
    %1 = arith.addi %0, %arg1 : i32
    %c0_i32 = arith.constant 0 : i32
    %c0_i32_0 = arith.constant 0 : i32
    return %1, %c0_i32 : i32, i32
  }
  func.func @transform_1(%arg0: i32, %arg1: i32) -> (i32, i32) {
    %c1_i32 = arith.constant 1 : i32
    %0 = arith.muli %arg0, %c1_i32 : i32
    %1 = arith.addi %0, %arg1 : i32
    %c0_i32 = arith.constant 0 : i32
    %c0_i32_0 = arith.constant 0 : i32
    return %1, %c0_i32 : i32, i32
  }
  func.func @transform_2(%arg0: i32, %arg1: i32) -> (i32, i32) {
    %c0_i32 = arith.constant 0 : i32
    %c0_i32_0 = arith.constant 0 : i32
    return %arg0, %c0_i32 : i32, i32
  }
}

</mosaic_0001>

<llo_original>
// kernel: tpu_custom_call.1
$region0: #{tpu_custom_call.1}
  #allocation0 [shape = 'u32[]', space=smem, size = 0x4, offset = 0x4, fixed_abs, tag = 'smem constant byte address 0x4 - core index']
  #allocation1 [shape = 'u32[72,128]{1,0:T(1,128)}', space=vmem, size = 0x9000, scoped, tag = 'internal scratch']
  %s0 = inlined_call_operand.hbm [shape: f32[8,128], index: 0, kind: input, shape index: {}]
  %s1 = inlined_call_operand.hbm [shape: s32[8,128], index: 1, kind: input, shape index: {}]
  %s2 = inlined_call_operand.hbm [shape: f32[8,128], index: 2, kind: output, shape index: {}]
  %s3 = sld [smem:[#allocation0]]
  $region30: #{tpu_custom_call.1} parent=0
    _
  %s5 = ssub.s32 1, %s3
  %s6 = scalar_select 0, %s5, %s3
  $region1: #{tpu_custom_call.1} parent=0
    #allocation2 [shape = 'u8[4096]{0}', space=vmem, size = 0x1000, scoped, tag = 'input window, operand 0, single buffered']
    #allocation3 [shape = 's32[1]{0}', space=sflag, size = 0x4, scoped, tag = 'scoped memory for tpu_custom_call.1']
    #allocation4 [shape = 's32[1]{0}', space=sflag, size = 0x4, scoped, tag = 'scoped memory for tpu_custom_call.1']
    #allocation5 [shape = 'u8[4096]{0}', space=vmem, size = 0x1000, scoped, tag = 'input window, operand 1, single buffered']
    #allocation6 [shape = 's32[1]{0}', space=sflag, size = 0x4, scoped, tag = 'scoped memory for tpu_custom_call.1']
    #allocation7 [shape = 'u8[4096]{0}', space=vmem, size = 0x1000, scoped, tag = 'output window, operand 0, single buffered']
    %7 = vsyncpa [#allocation3], 0
    %8 = vsyncpa [#allocation6], 0
    %9 = vsyncpa [#allocation4], 0
    // Predicated region
    $region2: #{tpu_custom_call.1} parent=1 // pred_check
      _
    $region3: #{tpu_custom_call.1} parent=1 // pred_check_branch
      %11 = sbr.rel (0) target = $region5
    $region4: #{tpu_custom_call.1} parent=1 // pred_region
      %s12 = sadd.s32 0, 0
      %14 = vsyncadd [#allocation3], 0
      %s15 = smul.addr %s12, 8
      %s16 = scalar_lea.hbm %s0, %s15
      %s18 = sshll.u32 %s16, 4
      %s19 = int_to_ptr.hbm [resolvable:$true] %s18
      %s20 = sshll.u32 [#allocation2], 4
      %s21 = int_to_ptr.vmem [resolvable:$true] %s20
      %23 = dma.hbm_to_vmem [thread:$0]  %s19, 128, %s21, [#allocation3]
    $region5: #{tpu_custom_call.1} parent=1 // pred_fallthru
      _
    // Predicated region
    $region6: #{tpu_custom_call.1} parent=1 // pred_check
      _
    $region7: #{tpu_custom_call.1} parent=1 // pred_check_branch
      %25 = sbr.rel (0) target = $region9
    $region8: #{tpu_custom_call.1} parent=1 // pred_region
      %s26 = sadd.s32 0, 0
      %28 = vsyncadd [#allocation6], 0
      %s29 = smul.addr %s26, 8
      %s30 = scalar_lea.hbm %s1, %s29
      %s32 = sshll.u32 %s30, 4
      %s33 = int_to_ptr.hbm [resolvable:$true] %s32
      %s34 = sshll.u32 [#allocation5], 4
      %s35 = int_to_ptr.vmem [resolvable:$true] %s34
      %37 = dma.hbm_to_vmem [thread:$0]  %s33, 128, %s35, [#allocation6]
    $region9: #{tpu_custom_call.1} parent=1 // pred_fallthru
      _
    // Predicated region
    $region10: #{tpu_custom_call.1} parent=1 // pred_check
      _
    $region11: #{tpu_custom_call.1} parent=1 // pred_check_branch
      %39 = sbr.rel (0) target = $region13
    $region12: #{tpu_custom_call.1} parent=1 // pred_region
      %41 = dma.done [#allocation3], 128
    $region13: #{tpu_custom_call.1} parent=1 // pred_fallthru
      _
    // Predicated region
    $region14: #{tpu_custom_call.1} parent=1 // pred_check
      _
    $region15: #{tpu_custom_call.1} parent=1 // pred_check_branch
      %43 = sbr.rel (0) target = $region17
    $region16: #{tpu_custom_call.1} parent=1 // pred_region
      %45 = dma.done [#allocation6], 128
    $region17: #{tpu_custom_call.1} parent=1 // pred_fallthru
      _
    %s46 = sadd.s32 0, 0
    %s47 = sadd.s32 0, 0
    %p48 = scmp.eq.s32.totalorder 0, 0
    // Predicated region
    $region18: #{tpu_custom_call.1} parent=1 // pred_check
      %p49 = pneg %p48
    $region19: #{tpu_custom_call.1} parent=1 // pred_check_branch
      %51 = sbr.rel (%p49) target = $region21
    $region20: #{tpu_custom_call.1} parent=1 // pred_region
      %52 = vst [vmem:[#allocation7] sm:$0xff] 0.0
    $region21: #{tpu_custom_call.1} parent=1 // pred_fallthru
      _
    %v53 = vld [vmem:[#allocation2] sm:$0xff]
    %v54 = vld [vmem:[#allocation5] sm:$0xff]
    %vm55 = vcmp.ne.s32.totalorder %v54, 0
    %v56 = vmax.f32 %v53, 0.0
    %v57 = vsel %vm55, %v53, 0.0
    %v58 = vsub.f32 %v56, %v57
    %v59 = vand.u32 2147483647, %v53
    %v60 = vsub.f32 0.0, %v59
    %v61 = vmul.f32 %v60, 1.442695
    %v62 = vpow.pop %v61
    %v63 = vadd.f32 %v62, 1.0
    %v64 = vlog2.pop %v63
    %v65 = vmul.f32 %v64, 0.6931472
    %v66 = vadd.f32 %v58, %v65
    %v67 = vld [vmem:[#allocation7] sm:$0xff]
    %v68 = vadd.f32 %v66, 0.0
    %v69 = vadd.f32 %v67, %v68
    %70 = vst [vmem:[#allocation7] sm:$0xff] %v69
    // Predicated region
    $region22: #{tpu_custom_call.1} parent=1 // pred_check
      _
    $region23: #{tpu_custom_call.1} parent=1 // pred_check_branch
      %72 = sbr.rel (0) target = $region25
    $region24: #{tpu_custom_call.1} parent=1 // pred_region
      %74 = vsyncadd [#allocation4], 0
      %s76 = sshll.u32 [#allocation7], 4
      %s77 = int_to_ptr.vmem [resolvable:$true] %s76
      %s78 = sshll.u32 %s2, 4
      %s79 = int_to_ptr.hbm [resolvable:$true] %s78
      %81 = dma.vmem_to_hbm [thread:$0]  %s77, 128, %s79, [#allocation4]
    $region25: #{tpu_custom_call.1} parent=1 // pred_fallthru
      _
    // Predicated region
    $region26: #{tpu_custom_call.1} parent=1 // pred_check
      _
    $region27: #{tpu_custom_call.1} parent=1 // pred_check_branch
      %83 = sbr.rel (0) target = $region29
    $region28: #{tpu_custom_call.1} parent=1 // pred_region
      %85 = dma.done [#allocation4], 128
    $region29: #{tpu_custom_call.1} parent=1 // pred_fallthru
      _
    %86 = vsyncpa [#allocation3], 1
    %87 = vsyncpa [#allocation6], 1
    %88 = vsyncpa [#allocation4], 1

</llo_original>
